<compile_context>
chip_gen: v7x
topology: tpu7x:2x2x1
jax: 0.10.0
libtpu: 0.0.40
codegen_flags: <defaults>
</compile_context>

<pallas_src>
import math
import numpy as np
import jax
import jax.numpy as jnp
from jax import lax
from jax.experimental import pallas as pl
from jax.experimental.pallas import tpu as pltpu

NEG_SLOPE = 0.5  # LeakyReLU negative_slope in BasicConv2d


def _pair(v):
    return (v, v) if isinstance(v, int) else tuple(v)


def _round_up(x, m):
    return (x + m - 1) // m * m


def _vmem_budget_and_limit():
    """Chip-aware (per-TensorCore) VMEM budget for tiling + scoped limit."""
    try:
        phys = int(pltpu.get_tpu_info().vmem_capacity_bytes)
    except Exception:
        phys = 64 * 1024 * 1024            # conservative default (v7x per-TC VMEM)
    budget = int(phys * 0.70)              # headroom for compiler scratch / misc
    limit = min(phys - 4 * 1024 * 1024, budget + 16 * 1024 * 1024)
    return budget, int(limit)


def _choose_row_tile(n_rows, k_pad, ncols_pad, vmem_budget, in_bytes=2, out_bytes=4,
                     max_tn=1024):
    """Row tile TN (multiple of 8) sized against the per-TC VMEM budget."""
    fixed = in_bytes * k_pad * ncols_pad + 4 * ncols_pad            # resident W_big + bias (1x buffered)
    per_row = 2 * in_bytes * k_pad + 2 * out_bytes * ncols_pad + 2 * 4 * ncols_pad
    avail = vmem_budget - fixed
    tn = avail // per_row if avail > per_row * 8 else 8
    tn = max(8, min(max_tn, int(tn) // 8 * 8))
    npad8 = _round_up(max(n_rows, 1), 8)
    if npad8 >= 16:
        # keep >= 2 grid steps: DMA/compute overlap + both TensorCores busy on v7x
        tn = min(tn, _round_up((npad8 + 1) // 2, 8))
    else:
        tn = min(tn, npad8)
    if tn >= 256:
        tn = tn // 256 * 256               # MXU-aligned M (v6e/v7x 256x256 tiles)
    elif tn >= 128:
        tn = tn // 128 * 128               # (v5e 128x128 tiles)
    npad = _round_up(max(n_rows, 1), tn)
    return int(tn), int(npad)


def _resident_spec(block_shape, index_map):
    """Constant-index BlockSpec, single-buffered when the API supports it."""
    try:
        return pl.BlockSpec(block_shape, index_map, pipeline_mode=pl.Buffered(1))
    except (TypeError, AttributeError):
        return pl.BlockSpec(block_shape, index_map)


def _make_kernel(neg_slope):
    def kernel(x_ref, w_ref, b_ref, o_ref):
        # bf16 @ bf16 -> f32 accumulate on the MXU; fused bias + LeakyReLU epilogue.
        acc = jnp.dot(x_ref[...], w_ref[...], preferred_element_type=jnp.float32)
        y = acc + b_ref[...]
        y = jnp.where(y >= 0.0, y, neg_slope * y)
        o_ref[...] = y.astype(o_ref.dtype)
    return kernel


def make_basic_conv2d(weight, bias, stride, padding, neg_slope=NEG_SLOPE):
    """BasicConv2d forward factory.

    weight : (Cout, Cin, KH, KW) (PyTorch OIHW layout), bias : (Cout,)
    Returned fn maps x (B, Cin, H, W) f32 -> (B, Cout, Hout, Wout) f32.
    """
    w_np = np.asarray(weight, dtype=np.float32)
    b_np = np.asarray(bias, dtype=np.float32)
    sh, sw = _pair(stride)
    ph, pw = _pair(padding)
    Cout, Cin, KH, KW = w_np.shape
    vmem_budget, vmem_limit = _vmem_budget_and_limit()
    cache = {}

    def _packed_weights(W):
        if W in cache:
            return cache[W]
        Wout = (W + 2 * pw - KW) // sw + 1
        assert Wout >= 1
        K = KH * W * Cin
        K_pad = _round_up(K, 128)
        WCout = Wout * Cout
        WCout_pad = _round_up(WCout, 128)
        # W_big[(kh, wi, ci), (wo, co)] = weight[co, ci, kh, kw], kw = wi - wo*sw + pw,
        # zero when the tap falls outside [0, KW) or outside the unpadded width.
        wb = np.zeros((KH, W, Cin, Wout, Cout), np.float32)
        wo = np.arange(Wout)
        for kh in range(KH):
            for kw in range(KW):
                wi = wo * sw + kw - pw
                m = (wi >= 0) & (wi < W)
                if m.any():
                    wb[kh, wi[m], :, wo[m], :] = w_np[:, :, kh, kw].T
        w_big = np.zeros((K_pad, WCout_pad), np.float32)
        w_big[:K, :WCout] = wb.reshape(K, WCout)
        b_big = np.zeros((1, WCout_pad), np.float32)
        b_big[0, :WCout] = np.tile(b_np, Wout)
        packed = (jnp.asarray(w_big, dtype=jnp.bfloat16),
                  jnp.asarray(b_big, dtype=jnp.float32),
                  Wout, K, K_pad, WCout, WCout_pad)
        cache[W] = packed
        return packed

    # TODO(synk): for very large W, band-tile W_big along Wout (extra grid axis + per-tile
    # input window) to restore MXU K-utilization (~KW/W here) and keep the weight block in
    # VMEM; the dense band is fine at model_ac_strain's widths.
    def apply(x_nchw):
        B, Cin_x, H, W = x_nchw.shape
        assert Cin_x == Cin, (Cin_x, Cin)
        w_big, b_big, Wout, K, K_pad, WCout, WCout_pad = _packed_weights(W)
        Hout = (H + 2 * ph - KH) // sh + 1
        assert Hout >= 1
        N = B * Hout

        # TODO(synk): keep activations in this (N, K) row layout (or NHWC) between layers
        # to drop the NCHW<->NHWC transposes around the kernel.
        x = x_nchw.transpose(0, 2, 3, 1)                              # NHWC
        if ph:
            x = jnp.pad(x, ((0, 0), (ph, ph), (0, 0), (0, 0)))        # H padding only
        views = [x[:, kh: kh + (Hout - 1) * sh + 1: sh] for kh in range(KH)]
        if KH == 1:
            rows = views[0].reshape(N, K)
        else:
            rows = jnp.stack(views, axis=2).reshape(N, K)             # (N, KH*W*Cin)
        rows = rows.astype(jnp.bfloat16)

        TN, Npad = _choose_row_tile(N, K_pad, WCout_pad, vmem_budget)
        if Npad != N or K_pad != K:
            rows = jnp.pad(rows, ((0, Npad - N), (0, K_pad - K)))

        cost = pl.CostEstimate(
            flops=2 * Npad * K_pad * WCout_pad,
            transcendentals=0,
            bytes_accessed=2 * Npad * K_pad + 2 * K_pad * WCout_pad
            + 4 * WCout_pad + 4 * Npad * WCout_pad,
        )

        out = pl.pallas_call(
            _make_kernel(neg_slope),
            out_shape=jax.ShapeDtypeStruct((Npad, WCout_pad), jnp.float32),
            grid=(Npad // TN,),
            in_specs=[
                pl.BlockSpec((TN, K_pad), lambda i: (i, 0)),          # pipelined row tiles
                _resident_spec((K_pad, WCout_pad), lambda i: (0, 0)),  # resident weights
                _resident_spec((1, WCout_pad), lambda i: (0, 0)),      # resident bias
            ],
            out_specs=pl.BlockSpec((TN, WCout_pad), lambda i: (i, 0)),
            compiler_params=pltpu.CompilerParams(
                dimension_semantics=("parallel",),    # shard row tiles across TCs (v7x)
                vmem_limit_bytes=vmem_limit,
            ),
            cost_estimate=cost,
        )(rows, w_big, b_big)

        y = out[:N, :WCout].reshape(B, Hout, Wout, Cout)
        return y.transpose(0, 3, 1, 2).astype(x_nchw.dtype)           # back to NCHW

    return jax.jit(apply)


# ----------------------------------------------------------------------------
# Pure-JAX reference for numerical verification.
# ----------------------------------------------------------------------------
def basic_conv2d_ref(x, weight, bias, stride, padding, neg_slope=NEG_SLOPE):
    sh, sw = _pair(stride)
    ph, pw = _pair(padding)
    y = lax.conv_general_dilated(
        x, weight, window_strides=(sh, sw), padding=((ph, ph), (pw, pw)),
        dimension_numbers=("NCHW", "OIHW", "NCHW"),
        precision=lax.Precision.HIGHEST)
    y = y + bias[None, :, None, None]
    return jnp.where(y >= 0.0, y, neg_slope * y)


# ----------------------------------------------------------------------------
if __name__ == "__main__":
    def run_case(key, B, Cin, H, W, Cout, ksize, stride, padding):
        kh, kw = _pair(ksize)
        k1, k2, k3 = jax.random.split(key, 3)
        fan_in = Cin * kh * kw
        bound = 1.0 / math.sqrt(fan_in)
        weight = jax.random.uniform(k1, (Cout, Cin, kh, kw), jnp.float32, -bound, bound)
        bias = jax.random.uniform(k2, (Cout,), jnp.float32, -bound, bound)
        x = jax.random.normal(k3, (B, Cin, H, W), jnp.float32)

        conv = make_basic_conv2d(weight, bias, stride, padding)
        out = jax.block_until_ready(conv(x))
        ref = jax.block_until_ready(basic_conv2d_ref(x, weight, bias, stride, padding))
        assert out.shape == ref.shape, (out.shape, ref.shape)
        np.testing.assert_allclose(np.asarray(out), np.asarray(ref), rtol=2e-2, atol=2e-2)

    k1, k2 = jax.random.split(jax.random.PRNGKey(0))
    # Generic 3x3 conv, stride 1, padding 1.
    run_case(k1, B=2, Cin=4, H=16, W=16, Cout=8, ksize=(3, 3), stride=(1, 1), padding=(1, 1))
    # model_ac_strain-style width-only conv: (1,5) kernel, stride (1,2), padding (0,2).
    run_case(k2, B=2, Cin=16, H=8, W=16, Cout=32, ksize=(1, 5), stride=(1, 2), padding=(0, 2))

    print("KERNEL_OK")
</pallas_src>

<mosaic_0001>
module attributes {stable_mosaic.version = 11 : i64} {
  func.func @kernel(%arg0: i32, %arg1: memref<16x256xbf16, #tpu.memory_space<vmem>>, %arg2: memref<256x128xbf16, #tpu.memory_space<vmem>>, %arg3: memref<1x128xf32, #tpu.memory_space<vmem>>, %arg4: memref<16x128xf32, #tpu.memory_space<vmem>>) attributes {dimension_semantics = [#tpu.dimension_semantics<parallel>], iteration_bounds = array<i64: 2>, scalar_prefetch = 0 : i64, scratch_operands = 0 : i64, tpu.core_type = #tpu.core_type<tc>, window_params = [{transform_indices = @transform_0, window_bounds = array<i64: 16, 256>}, {pipeline_mode = #tpu.pipeline_mode<synchronous>, transform_indices = @transform_1, window_bounds = array<i64: 256, 128>}, {pipeline_mode = #tpu.pipeline_mode<synchronous>, transform_indices = @transform_2, window_bounds = array<i64: 1, 128>}, {transform_indices = @transform_3, window_bounds = array<i64: 16, 128>}]} {
    %c0 = arith.constant 0 : index
    %c0_0 = arith.constant 0 : index
    %0 = vector.load %arg1[%c0, %c0_0] : memref<16x256xbf16, #tpu.memory_space<vmem>>, vector<16x256xbf16>
    %c0_1 = arith.constant 0 : index
    %c0_2 = arith.constant 0 : index
    %1 = vector.load %arg2[%c0_1, %c0_2] : memref<256x128xbf16, #tpu.memory_space<vmem>>, vector<256x128xbf16>
    %cst = arith.constant dense<0.000000e+00> : vector<16x128xf32>
    %2 = tpu.matmul %0, %1, %cst {dimension_numbers = #tpu.dot_dimension_numbers<[1], [0], [0], [1], [0, 0, 1, 1], [], []>} : vector<16x256xbf16>, vector<256x128xbf16>, vector<16x128xf32> -> vector<16x128xf32>
    %c0_3 = arith.constant 0 : index
    %c0_4 = arith.constant 0 : index
    %3 = vector.load %arg3[%c0_3, %c0_4] : memref<1x128xf32, #tpu.memory_space<vmem>>, vector<1x128xf32>
    %4 = vector.broadcast %3 : vector<1x128xf32> to vector<16x128xf32>
    %5 = arith.addf %2, %4 : vector<16x128xf32>
    %cst_5 = arith.constant 0.000000e+00 : f32
    %6 = vector.broadcast %cst_5 : f32 to vector<16x128xf32>
    %7 = arith.cmpf oge, %5, %6 : vector<16x128xf32>
    %cst_6 = arith.constant 5.000000e-01 : f32
    %8 = vector.broadcast %cst_6 : f32 to vector<16x128xf32>
    %9 = arith.mulf %8, %5 : vector<16x128xf32>
    %10 = arith.select %7, %5, %9 : vector<16x128xi1>, vector<16x128xf32>
    %c0_7 = arith.constant 0 : index
    %c0_8 = arith.constant 0 : index
    %11 = vector.load %arg4[%c0_7, %c0_8] : memref<16x128xf32, #tpu.memory_space<vmem>>, vector<16x128xf32>
    tpu.vector_store %arg4[%c0_7, %c0_8], %10 {strides = array<i32>} : memref<16x128xf32, #tpu.memory_space<vmem>>, vector<16x128xf32>,
    return
  }
  func.func @transform_0(%arg0: i32) -> (i32, i32) {
    %c0_i32 = arith.constant 0 : i32
    %c0_i32_0 = arith.constant 0 : i32
    return %arg0, %c0_i32 : i32, i32
  }
  func.func @transform_1(%arg0: i32) -> (i32, i32) {
    %c0_i32 = arith.constant 0 : i32
    %c0_i32_0 = arith.constant 0 : i32
    %c0_i32_1 = arith.constant 0 : i32
    return %c0_i32, %c0_i32_0 : i32, i32
  }
  func.func @transform_2(%arg0: i32) -> (i32, i32) {
    %c0_i32 = arith.constant 0 : i32
    %c0_i32_0 = arith.constant 0 : i32
    %c0_i32_1 = arith.constant 0 : i32
    return %c0_i32, %c0_i32_0 : i32, i32
  }
  func.func @transform_3(%arg0: i32) -> (i32, i32) {
    %c0_i32 = arith.constant 0 : i32
    %c0_i32_0 = arith.constant 0 : i32
    return %arg0, %c0_i32 : i32, i32
  }
}

</mosaic_0001>

<llo_original>
// kernel: apply.1
$region0: #{apply.1}
  #allocation0 [shape = 'u32[]', space=smem, size = 0x4, offset = 0x4, fixed_abs, tag = 'smem constant byte address 0x4 - core index']
  #allocation1 [shape = 'u32[144,128]{1,0:T(1,128)}', space=vmem, size = 0x12000, scoped, tag = 'internal scratch']
  %s0 = inlined_call_operand.vmem [shape: bf16[32,256], index: 0, kind: input, shape index: {}]
  %s1 = inlined_call_operand.vmem [shape: bf16[256,128], index: 1, kind: input, shape index: {}]
  %s2 = inlined_call_operand.vmem [shape: f32[1,128], index: 2, kind: input, shape index: {}]
  %s3 = inlined_call_operand.vmem [shape: f32[32,128], index: 3, kind: output, shape index: {}]
  %s4 = sld [smem:[#allocation0]]
  $region45: #{apply.1} parent=0
    _
  %s6 = ssub.s32 1, %s4
  %s7 = scalar_select 0, %s6, %s4
  loop: start=0, step=1, limit=4
  $region2: #{apply.1} parent=0 // loop_pre_header
    _
  $region3: #{apply.1} parent=0 // loop_header
    %s9 = sphi 0, %s13
    %p10 = scmp.ge.s32.totalorder %s9, 4
    %s19 = sphi 0, %s21
    %s22 = sphi 0, %s19
    %s23 = sphi 0, %s22
    %s39 = sphi 0, %s23
    %s43 = sphi 0, %s43
    %s45 = sphi 0, %s43
    %s46 = sphi 0, %s45
    %s60 = sphi 0, %s46
    %s64 = sphi 0, %s64
    %s66 = sphi 0, %s64
    %s67 = sphi 0, %s66
    %s81 = sphi 0, %s67
    %s87 = sphi 0, %s89
    %s90 = sphi 0, %s87
    %s91 = sphi 0, %s90
    %s107 = sphi 0, %s91
  $region4: #{apply.1} parent=0 // loop_header_branch
    %12 = sbr.rel (%p10) target = $region8
  $region5: #{apply.1} parent=0 // loop_body
    %s14 = ssub.s32 %s9, 1
    %s15 = ssub.s32 %s9, 2
    %s16 = sadd.s32 %s9, 1
    %s17 = ssub.s32 %s9, %s16
    %p18 = scmp.eq.s32.totalorder %s17, 0
    %s20 = sadd.s32 %s19, 1
    %s21 = scalar_select %p18, %s19, %s20
    %p24 = pneg %p18
    %p25 = scmp.eq.s32.totalorder %s9, 1
    %p26 = por %p24, %p25
    %p27 = scmp.ne.s32.totalorder %s19, %s22
    %p28 = scmp.eq.s32.totalorder %s9, 0
    %p29 = por %p27, %p28
    %p30 = scmp.ne.s32.totalorder %s19, %s22
    %p31 = scmp.eq.s32.totalorder %s14, 1
    %p32 = por %p30, %p31
    %p33 = scmp.ne.s32.totalorder %s22, %s23
    %p34 = scmp.eq.s32.totalorder %s14, 0
    %p35 = por %p33, %p34
    %p36 = scmp.ne.s32.totalorder %s22, %s23
    %p37 = scmp.eq.s32.totalorder %s15, 1
    %p38 = por %p36, %p37
    %p40 = scmp.ne.s32.totalorder %s23, %s39
    %p41 = scmp.eq.s32.totalorder %s15, 0
    %p42 = por %p40, %p41
    %s44 = sadd.s32 %s43, 1
    %p47 = scmp.eq.s32.totalorder %s9, 1
    %p48 = scmp.ne.s32.totalorder %s43, %s45
    %p49 = scmp.eq.s32.totalorder %s9, 0
    %p50 = por %p48, %p49
    %p51 = scmp.ne.s32.totalorder %s43, %s45
    %p52 = scmp.eq.s32.totalorder %s14, 1
    %p53 = por %p51, %p52
    %p54 = scmp.ne.s32.totalorder %s45, %s46
    %p55 = scmp.eq.s32.totalorder %s14, 0
    %p56 = por %p54, %p55
    %p57 = scmp.ne.s32.totalorder %s45, %s46
    %p58 = scmp.eq.s32.totalorder %s15, 1
    %p59 = por %p57, %p58
    %p61 = scmp.ne.s32.totalorder %s46, %s60
    %p62 = scmp.eq.s32.totalorder %s15, 0
    %p63 = por %p61, %p62
    %s65 = sadd.s32 %s64, 1
    %p68 = scmp.eq.s32.totalorder %s9, 1
    %p69 = scmp.ne.s32.totalorder %s64, %s66
    %p70 = scmp.eq.s32.totalorder %s9, 0
    %p71 = por %p69, %p70
    %p72 = scmp.ne.s32.totalorder %s64, %s66
    %p73 = scmp.eq.s32.totalorder %s14, 1
    %p74 = por %p72, %p73
    %p75 = scmp.ne.s32.totalorder %s66, %s67
    %p76 = scmp.eq.s32.totalorder %s14, 0
    %p77 = por %p75, %p76
    %p78 = scmp.ne.s32.totalorder %s66, %s67
    %p79 = scmp.eq.s32.totalorder %s15, 1
    %p80 = por %p78, %p79
    %p82 = scmp.ne.s32.totalorder %s67, %s81
    %p83 = scmp.eq.s32.totalorder %s15, 0
    %p84 = por %p82, %p83
    %s85 = ssub.s32 %s9, %s16
    %p86 = scmp.eq.s32.totalorder %s85, 0
    %s88 = sadd.s32 %s87, 1
    %s89 = scalar_select %p86, %s87, %s88
    %p92 = pneg %p86
    %p93 = scmp.eq.s32.totalorder %s9, 1
    %p94 = por %p92, %p93
    %p95 = scmp.ne.s32.totalorder %s87, %s90
    %p96 = scmp.eq.s32.totalorder %s9, 0
    %p97 = por %p95, %p96
    %p98 = scmp.ne.s32.totalorder %s87, %s90
    %p99 = scmp.eq.s32.totalorder %s14, 1
    %p100 = por %p98, %p99
    %p101 = scmp.ne.s32.totalorder %s90, %s91
    %p102 = scmp.eq.s32.totalorder %s14, 0
    %p103 = por %p101, %p102
    %p104 = scmp.ne.s32.totalorder %s90, %s91
    %p105 = scmp.eq.s32.totalorder %s15, 1
    %p106 = por %p104, %p105
    %p108 = scmp.ne.s32.totalorder %s91, %s107
    %p109 = scmp.eq.s32.totalorder %s15, 0
    %p110 = por %p108, %p109
    %p111 = scmp.le.s32.totalorder 1, %s9
    %p112 = scmp.lt.s32.totalorder %s9, 3
    %p113 = pnand %p111, %p112
    %p114 = pneg %p113
    // Predicated region
    $region9: #{apply.1} parent=5 // pred_check
      _
    $region10: #{apply.1} parent=5 // pred_check_branch
      %116 = sbr.rel (%p113) target = $region12
    $region11: #{apply.1} parent=5 // pred_region
      %s117 = ssub.s32 %s9, 1
      // Predicated region
      $region13: #{apply.1} parent=11 // pred_check
        %p118 = pneg %p56
      $region14: #{apply.1} parent=11 // pred_check_branch
        %120 = sbr.rel (%p118) target = $region16
      $region15: #{apply.1} parent=11 // pred_region
        _
      $region16: #{apply.1} parent=11 // pred_fallthru
        _
      // Predicated region
      $region17: #{apply.1} parent=11 // pred_check
        %p121 = pneg %p77
      $region18: #{apply.1} parent=11 // pred_check_branch
        %123 = sbr.rel (%p121) target = $region20
      $region19: #{apply.1} parent=11 // pred_region
        _
      $region20: #{apply.1} parent=11 // pred_fallthru
        _
    $region12: #{apply.1} parent=5 // pred_fallthru
      _
    %p124 = scmp.lt.s32.totalorder %s9, 2
    // Predicated region
    $region21: #{apply.1} parent=5 // pred_check
      %p125 = pneg %p124
    $region22: #{apply.1} parent=5 // pred_check_branch
      %127 = sbr.rel (%p125) target = $region24
    $region23: #{apply.1} parent=5 // pred_region
      // Predicated region
      $region25: #{apply.1} parent=23 // pred_check
        %p128 = pneg %p29
      $region26: #{apply.1} parent=23 // pred_check_branch
        %130 = sbr.rel (%p128) target = $region28
      $region27: #{apply.1} parent=23 // pred_region
        %s131 = smul.u32 2, %s9
        %p132 = scmp.lt.s32.totalorder %s131, 3
        %s133 = scalar_select %p132, %s131, 3
        %s134 = smul.addr %s133, 2
        %s135 = smul.addr %s134, 4
        %s136 = scalar_lea.vmem %s0, %s135
        %s137 = smul.u32 2, %s9
      $region28: #{apply.1} parent=23 // pred_fallthru
        _
    $region24: #{apply.1} parent=5 // pred_fallthru
      _
    %p138 = scmp.le.s32.totalorder 1, %s9
    %p139 = scmp.lt.s32.totalorder %s9, 3
    %p140 = pnand %p138, %p139
    %p141 = pneg %p140
    // Predicated region
    $region29: #{apply.1} parent=5 // pred_check
      _
    $region30: #{apply.1} parent=5 // pred_check_branch
      %143 = sbr.rel (%p140) target = $region32
    $region31: #{apply.1} parent=5 // pred_region
      %s144 = ssub.s32 %s9, 1
      %s145 = smul.u32 2, %s14
      %p146 = scmp.lt.s32.totalorder %s145, 3
      %s147 = scalar_select %p146, %s145, 3
      %s148 = smul.addr %s147, 2
      %s149 = smul.addr %s148, 4
      %s150 = scalar_lea.vmem %s0, %s149
      %p151 = pneg %p35
      %p152 = pneg %p32
      %p153 = pneg %p56
      %p154 = pneg %p53
      %p155 = pneg %p77
      %p156 = pneg %p74
      %p157 = pneg %p103
      %p158 = pneg %p100
      %s159 = smul.u32 2, %s14
      %p160 = scmp.lt.s32.totalorder %s159, 3
      %s161 = scalar_select %p160, %s159, 3
      %s162 = smul.addr %s161, 8
      %s163 = scalar_lea.vmem %s3, %s162
      %s164 = smul.u32 2, %s14
      %p165 = scmp.lt.s32.totalorder %s164, 3
      %s166 = scalar_select %p165, %s164, 3
      %s167 = smul.addr %s166, 2
      %s168 = smul.addr %s167, 4
      %s169 = scalar_lea.vmem %s0, %s168
      %s170 = smul.u32 2, %s14
      %s171 = smul.u32 2, %s14
      %p172 = scmp.lt.s32.totalorder %s171, 3
      %s173 = scalar_select %p172, %s171, 3
      %s174 = smul.addr %s173, 8
      %s175 = scalar_lea.vmem %s3, %s174
      %s176 = smul.u32 2, %s14
      %v178 = vld [vmem:[%s169] sm:$0xff]
      %v179 = vld [vmem:[%s169 + $0x8] sm:$0xff]
      %v180 = vld [vmem:[%s1] sm:$0xf]
      %v181 = vld [vmem:[%s1 + $0x4] sm:$0xf]
      %v182 = vld [vmem:[%s1 + $0x8] sm:$0xf]
      %v183 = vld [vmem:[%s1 + $0xc] sm:$0xf]
      %v184 = vld [vmem:[%s1 + $0x10] sm:$0xf]
      %v185 = vld [vmem:[%s1 + $0x14] sm:$0xf]
      %v186 = vld [vmem:[%s1 + $0x18] sm:$0xf]
      %v187 = vld [vmem:[%s1 + $0x1c] sm:$0xf]
      %v188 = vld [vmem:[%s1 + $0x20] sm:$0xf]
      %v189 = vld [vmem:[%s1 + $0x24] sm:$0xf]
      %v190 = vld [vmem:[%s1 + $0x28] sm:$0xf]
      %v191 = vld [vmem:[%s1 + $0x2c] sm:$0xf]
      %v192 = vld [vmem:[%s1 + $0x30] sm:$0xf]
      %v193 = vld [vmem:[%s1 + $0x34] sm:$0xf]
      %v194 = vld [vmem:[%s1 + $0x38] sm:$0xf]
      %v195 = vld [vmem:[%s1 + $0x3c] sm:$0xf]
      %v196 = vld [vmem:[%s1 + $0x40] sm:$0xf]
      %v197 = vld [vmem:[%s1 + $0x44] sm:$0xf]
      %v198 = vld [vmem:[%s1 + $0x48] sm:$0xf]
      %v199 = vld [vmem:[%s1 + $0x4c] sm:$0xf]
      %v200 = vld [vmem:[%s1 + $0x50] sm:$0xf]
      %v201 = vld [vmem:[%s1 + $0x54] sm:$0xf]
      %v202 = vld [vmem:[%s1 + $0x58] sm:$0xf]
      %v203 = vld [vmem:[%s1 + $0x5c] sm:$0xf]
      %v204 = vld [vmem:[%s1 + $0x60] sm:$0xf]
      %v205 = vld [vmem:[%s1 + $0x64] sm:$0xf]
      %v206 = vld [vmem:[%s1 + $0x68] sm:$0xf]
      %v207 = vld [vmem:[%s1 + $0x6c] sm:$0xf]
      %v208 = vld [vmem:[%s1 + $0x70] sm:$0xf]
      %v209 = vld [vmem:[%s1 + $0x74] sm:$0xf]
      %v210 = vld [vmem:[%s1 + $0x78] sm:$0xf]
      %v211 = vld [vmem:[%s1 + $0x7c] sm:$0xf]
      %v212 = vld [vmem:[%s2] sm:$0x1]
      %v214 = vlaneseq
      %v215 = vshrl.u32 %v214, 7
      %v216 = vsub.s32 0, %v215
      %v217 = vrot.slane %v212, %v216
      %v221 = vunpack.c.l.b16 %v178
      %v222 = vunpack.c.h.b16 %v178
      %v223 = vunpack.c.l.b16 %v179
      %v224 = vunpack.c.h.b16 %v179
      %v225 = vpack.c.b16 %v223, %v221
      %v226 = vpack.c.b16 %v224, %v222
      %v261 = vunpack.c.l.b16 %v180
      %v262 = vunpack.c.l.b16 %v181
      %v263 = vunpack.c.l.b16 %v182
      %v264 = vunpack.c.l.b16 %v183
      %v265 = vunpack.c.l.b16 %v184
      %v266 = vunpack.c.l.b16 %v185
      %v267 = vunpack.c.l.b16 %v186
      %v268 = vunpack.c.l.b16 %v187
      %v269 = vunpack.c.l.b16 %v188
      %v270 = vunpack.c.l.b16 %v189
      %v271 = vunpack.c.l.b16 %v190
      %v272 = vunpack.c.l.b16 %v191
      %v273 = vunpack.c.l.b16 %v192
      %v274 = vunpack.c.l.b16 %v193
      %v275 = vunpack.c.l.b16 %v194
      %v276 = vunpack.c.l.b16 %v195
      %v277 = vunpack.c.l.b16 %v196
      %v278 = vunpack.c.l.b16 %v197
      %v279 = vunpack.c.l.b16 %v198
      %v280 = vunpack.c.l.b16 %v199
      %v281 = vunpack.c.l.b16 %v200
      %v282 = vunpack.c.l.b16 %v201
      %v283 = vunpack.c.l.b16 %v202
      %v284 = vunpack.c.l.b16 %v203
      %v285 = vunpack.c.l.b16 %v204
      %v286 = vunpack.c.l.b16 %v205
      %v287 = vunpack.c.l.b16 %v206
      %v288 = vunpack.c.l.b16 %v207
      %v289 = vunpack.c.l.b16 %v208
      %v290 = vunpack.c.l.b16 %v209
      %v291 = vunpack.c.l.b16 %v210
      %v292 = vunpack.c.l.b16 %v211
      %v293 = vpack.c.b16 %v262, %v261
      %v294 = vpack.c.b16 %v264, %v263
      %v295 = vpack.c.b16 %v266, %v265
      %v296 = vpack.c.b16 %v268, %v267
      %v297 = vpack.c.b16 %v270, %v269
      %v298 = vpack.c.b16 %v272, %v271
      %v299 = vpack.c.b16 %v274, %v273
      %v300 = vpack.c.b16 %v276, %v275
      %v301 = vpack.c.b16 %v278, %v277
      %v302 = vpack.c.b16 %v280, %v279
      %v303 = vpack.c.b16 %v282, %v281
      %v304 = vpack.c.b16 %v284, %v283
      %v305 = vpack.c.b16 %v286, %v285
      %v306 = vpack.c.b16 %v288, %v287
      %v307 = vpack.c.b16 %v290, %v289
      %v308 = vpack.c.b16 %v292, %v291
      %325 = vmatprep.subr.bf16.mxu0 0
      %326 = vmatpush1.bf16.msra.mxu0 %v293
      %327 = vmatprep.subr.bf16.mxu0 0
      %328 = vmatpush1.bf16.msra.mxu0 %v294
      %329 = vmatprep.subr.bf16.mxu0 0
      %330 = vmatpush1.bf16.msra.mxu0 %v295
      %331 = vmatprep.subr.bf16.mxu0 0
      %332 = vmatpush1.bf16.msra.mxu0 %v296
      %333 = vmatprep.subr.bf16.mxu0 0
      %334 = vmatpush1.bf16.msra.mxu0 %v297
      %335 = vmatprep.subr.bf16.mxu0 0
      %336 = vmatpush1.bf16.msra.mxu0 %v298
      %337 = vmatprep.subr.bf16.mxu0 0
      %338 = vmatpush1.bf16.msra.mxu0 %v299
      %339 = vmatprep.subr.bf16.mxu0 0
      %340 = vmatpush1.bf16.msra.mxu0 %v300
      %341 = vmatprep.subr.bf16.mxu0 0
      %342 = vmatpush1.bf16.msra.mxu0 %v301
      %343 = vmatprep.subr.bf16.mxu0 0
      %344 = vmatpush1.bf16.msra.mxu0 %v302
      %345 = vmatprep.subr.bf16.mxu0 0
      %346 = vmatpush1.bf16.msra.mxu0 %v303
      %347 = vmatprep.subr.bf16.mxu0 0
      %348 = vmatpush1.bf16.msra.mxu0 %v304
      %349 = vmatprep.subr.bf16.mxu0 0
      %350 = vmatpush1.bf16.msra.mxu0 %v305
      %351 = vmatprep.subr.bf16.mxu0 0
      %352 = vmatpush1.bf16.msra.mxu0 %v306
      %353 = vmatprep.subr.bf16.mxu0 0
      %354 = vmatpush1.bf16.msra.mxu0 %v307
      %355 = vmatprep.subr.bf16.mxu0 0
      %356 = vmatpush1.bf16.msra.mxu0 %v308
      %357 = vmatprep.mubr.bf16.mxu0 %v226
      %358 = vmatmul.mubr.bf16.gmra.mrb[0].mxu0 %v225
      %v359 = vpop.f32.mrb[0].mxu0
      %v360 = vadd.f32 %v217, %v359
      %v361 = vpop.f32.mrb[0].mxu0
      %v362 = vpop.f32.mrb[0].mxu0
      %v363 = vadd.f32 %v217, %v362
      %v364 = vpop.f32.mrb[0].mxu0
      %365 = vdwg.mxu0
      %vm366 = vcmp.ge.f32.partialorder %v360, 0.0
      %vm367 = vcmp.ge.f32.partialorder %v363, 0.0
      %v368 = vmul.f32 %v360, 0.5
      %v369 = vmul.f32 %v363, 0.5
      %v370 = vsel %vm366, %v360, %v368
      %v371 = vsel %vm367, %v363, %v369
      %372 = vst [vmem:[%s175] sm:$0xff] %v370
      %373 = vst [vmem:[%s175 + $0x8] sm:$0xff] %v371
      %s374 = smul.u32 2, %s14
      %p375 = scmp.lt.s32.totalorder %s374, 3
      %s376 = scalar_select %p375, %s374, 3
      %s377 = smul.addr %s376, 8
      %s378 = scalar_lea.vmem %s3, %s377
      // Predicated region
      $region33: #{apply.1} parent=31 // pred_check
        %p379 = pneg %p100
      $region34: #{apply.1} parent=31 // pred_check_branch
        %381 = sbr.rel (%p379) target = $region36
      $region35: #{apply.1} parent=31 // pred_region
        %s382 = smul.u32 2, %s14
      $region36: #{apply.1} parent=31 // pred_fallthru
        _
    $region32: #{apply.1} parent=5 // pred_fallthru
      _
    %p383 = scmp.le.s32.totalorder 2, %s9
    // Predicated region
    $region37: #{apply.1} parent=5 // pred_check
      %p384 = pneg %p383
    $region38: #{apply.1} parent=5 // pred_check_branch
      %386 = sbr.rel (%p384) target = $region40
    $region39: #{apply.1} parent=5 // pred_region
      %s387 = ssub.s32 %s9, 2
      // Predicated region
      $region41: #{apply.1} parent=39 // pred_check
        %p388 = pneg %p106
      $region42: #{apply.1} parent=39 // pred_check_branch
        %390 = sbr.rel (%p388) target = $region44
      $region43: #{apply.1} parent=39 // pred_region
        %s391 = smul.u32 2, %s15
        %p392 = scmp.lt.s32.totalorder %s391, 3
        %s393 = scalar_select %p392, %s391, 3
        %s394 = smul.addr %s393, 8
        %s395 = scalar_lea.vmem %s3, %s394
      $region44: #{apply.1} parent=39 // pred_fallthru
        _
    $region40: #{apply.1} parent=5 // pred_fallthru
      _
  $region6: #{apply.1} parent=0 // loop_footer
    %s13 = sadd.s32 1, %s9
  $region7: #{apply.1} parent=0 // loop_footer_branch
    %8 = sbr.rel target = $region3
  $region8: #{apply.1} parent=0 // loop_exit
    _

</llo_original>
